<compile_context>
chip_gen: v7x
topology: tpu7x:2x2x1
jax: 0.10.0
libtpu: 0.0.40
codegen_flags: <defaults>
</compile_context>

<pallas_src>
import jax
import jax.numpy as jnp
from jax.experimental import pallas as pl
from jax.experimental.pallas import tpu as pltpu

EPS = 1e-5
IN_FEATURES = 12
HIDDEN = 64
OUT_FEATURES = 1
MAX_TILE_B = 8192          # lane-dense batch tile upper bound


def _mlp_kernel(xT_ref, w1T_ref, b1_ref, whT_ref, bh_ref, wo_ref, bo_ref, out_ref):
    """Forward pass for one batch tile, feature-major (batch on the lane axis).

    xT_ref:  (12, TILE_B)  bf16  input activations, transposed
    w1T_ref: (64, 12)      bf16  layer_1 weight (out, in)
    b1_ref:  (64, 1)       f32   layer_1 bias (column)
    whT_ref: (3, 64, 64)   bf16  layer_2..4 weights (out, in), BN1..3 folded
    bh_ref:  (3, 64, 1)    f32   layer_2..4 biases (column), BN1..3 folded
    wo_ref:  (1, 64)       bf16  layer_out weight (row), BN4 folded
    bo_ref:  (1,)          f32   layer_out bias (SMEM scalar), BN4 folded
    out_ref: (1, TILE_B)   f32   logits, lane-dense
    """
    # Layer 1: (64,12) @ (12,TILE_B) on the MXU, f32 accumulate.
    h = jnp.dot(w1T_ref[...], xT_ref[...], preferred_element_type=jnp.float32)
    h = jnp.maximum(h + b1_ref[...], 0.0)

    # Layers 2..4 (BN folded): static unroll, constant slice indices.
    for i in range(3):
        h = jnp.dot(whT_ref[i], h.astype(jnp.bfloat16),
                    preferred_element_type=jnp.float32)
        h = jnp.maximum(h + bh_ref[i], 0.0)

    # Dropout is identity in eval mode.
    # Output layer (64 -> 1): lane-dense (1,64)@(64,TILE_B) MXU matmul.
    out = jnp.dot(wo_ref[...], h.astype(jnp.bfloat16),
                  preferred_element_type=jnp.float32)
    out_ref[...] = out + bo_ref[0]


def _choose_tile_b(batch):
    """Batch tile: multiple of 128 (lane width), large enough to amortize
    per-grid-step overhead, aiming for >= 2 tiles so both v7x TCs get work."""
    target = pl.cdiv(batch, 2)
    tile = ((target + 127) // 128) * 128
    return int(min(MAX_TILE_B, max(128, tile)))


@jax.jit
def binary_classification_forward(x, params):
    """x: (B, 12) float32. Returns (B, 1) float32 logits (eval mode)."""
    (w1, b1, wh, bh, gammas, betas, means, variances, wo, bo) = params

    # ---- Fold eval-mode BatchNorm into the *next* Linear (wrapper-side, f32) ----
    # BN_i(r) = r * s_i + t_i feeds layer_{i+1}:
    #   W'_{i+1} = diag(s_i) @ W_{i+1},  b'_{i+1} = b_{i+1} + t_i @ W_{i+1}
    s = gammas / jnp.sqrt(variances + EPS)                  # (4, 64)
    t = betas - means * s                                   # (4, 64)
    wh_f = s[:3][:, :, None] * wh                           # (3, 64, 64) (in, out)
    bh_f = bh + jnp.einsum("if,ifo->io", t[:3], wh)         # (3, 64)
    wo_f = s[3][:, None] * wo                               # (64, 1)   BN4 -> layer_out
    bo_f = bo + t[3] @ wo                                   # (1,)

    # (out, in) layouts for the feature-major kernel; MXU operands in bf16,
    # biases stay f32 for the VPU path.
    w1T_b = w1.T.astype(jnp.bfloat16)                       # (64, 12)
    whT_b = jnp.transpose(wh_f, (0, 2, 1)).astype(jnp.bfloat16)  # (3, 64, 64)
    wo_row_b = wo_f.reshape(1, HIDDEN).astype(jnp.bfloat16)      # (1, 64)
    b1_col = b1.reshape(HIDDEN, 1)
    bh_col = bh_f.reshape(3, HIDDEN, 1)

    # ---- Fused transpose + pad + bf16 cast of x: one wrapper HBM pass ----
    B = x.shape[0]
    tile_b = _choose_tile_b(B)
    num_tiles = pl.cdiv(B, tile_b)
    Bp = num_tiles * tile_b
    xT = x.T                                                # (12, B)
    if Bp != B:
        xT = jnp.pad(xT, ((0, 0), (0, Bp - B)))
    xT_b = xT.astype(jnp.bfloat16)                          # (12, Bp)

    const2 = lambda i: (0, 0)
    const3 = lambda i: (0, 0, 0)

    outT = pl.pallas_call(
        _mlp_kernel,
        out_shape=jax.ShapeDtypeStruct((OUT_FEATURES, Bp), jnp.float32),
        grid=(num_tiles,),
        in_specs=[
            # streaming, lane-dense input tile
            pl.BlockSpec((IN_FEATURES, tile_b), lambda i: (0, i)),
            # parameters: full arrays, constant index maps -> resident in VMEM
            pl.BlockSpec((HIDDEN, IN_FEATURES), const2),
            pl.BlockSpec((HIDDEN, 1), const2),
            pl.BlockSpec((3, HIDDEN, HIDDEN), const3),
            pl.BlockSpec((3, HIDDEN, 1), const3),
            pl.BlockSpec((OUT_FEATURES, HIDDEN), const2),
            # scalar output bias lives in SMEM
            pl.BlockSpec(memory_space=pltpu.MemorySpace.SMEM),
        ],
        out_specs=pl.BlockSpec((OUT_FEATURES, tile_b), lambda i: (0, i)),
        compiler_params=pltpu.CompilerParams(
            dimension_semantics=("parallel",),
            vmem_limit_bytes=32 * 1024 * 1024),
    )(xT_b, w1T_b, b1_col, whT_b, bh_col, wo_row_b, bo_f)

    return outT[:, :B].T                                    # (B, 1)


def init_params(key):
    """Deterministic parameter init mimicking PyTorch Linear defaults
    (uniform in +-1/sqrt(fan_in)); BN params are made non-trivial."""
    keys = jax.random.split(key, 16)

    def linear(kw, kb, fan_in, fan_out):
        bound = 1.0 / jnp.sqrt(fan_in)
        w = jax.random.uniform(kw, (fan_in, fan_out), jnp.float32, -bound, bound)
        b = jax.random.uniform(kb, (fan_out,), jnp.float32, -bound, bound)
        return w, b

    w1, b1 = linear(keys[0], keys[1], IN_FEATURES, HIDDEN)
    w2, b2 = linear(keys[2], keys[3], HIDDEN, HIDDEN)
    w3, b3 = linear(keys[4], keys[5], HIDDEN, HIDDEN)
    w4, b4 = linear(keys[6], keys[7], HIDDEN, HIDDEN)
    wo, bo = linear(keys[8], keys[9], HIDDEN, OUT_FEATURES)

    wh = jnp.stack([w2, w3, w4], axis=0)                    # (3, 64, 64) (in, out)
    bh = jnp.stack([b2, b3, b4], axis=0)                    # (3, 64)

    gammas = jax.random.uniform(keys[10], (4, HIDDEN), jnp.float32, 0.5, 1.5)
    betas = 0.1 * jax.random.normal(keys[11], (4, HIDDEN), jnp.float32)
    means = 0.1 * jax.random.normal(keys[12], (4, HIDDEN), jnp.float32)
    variances = jax.random.uniform(keys[13], (4, HIDDEN), jnp.float32, 0.5, 1.5)

    return (w1, b1, wh, bh, gammas, betas, means, variances, wo, bo)


def reference_forward_f32(x, params):
    """Exact eval-mode semantics of the PyTorch module, all float32."""
    (w1, b1, wh, bh, gammas, betas, means, variances, wo, bo) = params
    scale = gammas / jnp.sqrt(variances + EPS)
    shift = betas - means * scale

    h = jnp.maximum(x @ w1 + b1, 0.0) * scale[0] + shift[0]
    for i in range(3):
        h = jnp.maximum(h @ wh[i] + bh[i], 0.0) * scale[i + 1] + shift[i + 1]
    return h @ wo + bo                                      # dropout = identity (eval)


def reference_forward_bf16_folded(x, params):
    """Pure-JAX mirror of the kernel's BN-folded, bf16-MXU computation."""
    (w1, b1, wh, bh, gammas, betas, means, variances, wo, bo) = params
    s = gammas / jnp.sqrt(variances + EPS)
    t = betas - means * s
    wh_f = s[:3][:, :, None] * wh
    bh_f = bh + jnp.einsum("if,ifo->io", t[:3], wh)
    wo_f = s[3][:, None] * wo
    bo_f = bo + t[3] @ wo

    bf = jnp.bfloat16
    h = jnp.dot(x.astype(bf), w1.astype(bf), preferred_element_type=jnp.float32)
    h = jnp.maximum(h + b1, 0.0)
    for i in range(3):
        h = jnp.dot(h.astype(bf), wh_f[i].astype(bf),
                    preferred_element_type=jnp.float32)
        h = jnp.maximum(h + bh_f[i], 0.0)
    return (jnp.dot(h.astype(bf), wo_f.astype(bf),
                    preferred_element_type=jnp.float32) + bo_f)


if __name__ == "__main__":
    key = jax.random.PRNGKey(0)
    k_params, k_x = jax.random.split(key)

    params = init_params(k_params)
    B = 300                                                 # not a multiple of the tile
    x = jax.random.normal(k_x, (B, IN_FEATURES), jnp.float32)

    out = binary_classification_forward(x, params)
    out = jax.block_until_ready(out)
    assert out.shape == (B, 1)

    # 1) Matches a JAX mirror of the kernel's own (BN-folded, bf16-MXU) math.
    ref_bf16 = reference_forward_bf16_folded(x, params)
    assert jnp.allclose(out, ref_bf16, atol=2e-3, rtol=2e-3), \
        "mismatch vs bf16-folded reference"

    # 2) Close to the exact f32 eval-mode PyTorch semantics (bf16 rounding only).
    ref_f32 = reference_forward_f32(x, params)
    assert jnp.allclose(out, ref_f32, atol=5e-2, rtol=5e-2), \
        "mismatch vs exact f32 reference"

    print("KERNEL_OK")
</pallas_src>

<mosaic_0001>
module attributes {stable_mosaic.version = 11 : i64} {
  func.func @_mlp_kernel(%arg0: i32, %arg1: memref<12x256xbf16, #tpu.memory_space<vmem>>, %arg2: memref<64x12xbf16, #tpu.memory_space<vmem>>, %arg3: memref<64x1xf32, #tpu.memory_space<vmem>>, %arg4: memref<3x64x64xbf16, #tpu.memory_space<vmem>>, %arg5: memref<3x64x1xf32, #tpu.memory_space<vmem>>, %arg6: memref<1x64xbf16, #tpu.memory_space<vmem>>, %arg7: memref<1xf32, #tpu.memory_space<smem>>, %arg8: memref<1x256xf32, #tpu.memory_space<vmem>>) attributes {dimension_semantics = [#tpu.dimension_semantics<parallel>], iteration_bounds = array<i64: 2>, scalar_prefetch = 0 : i64, scratch_operands = 0 : i64, tpu.core_type = #tpu.core_type<tc>, window_params = [{transform_indices = @transform_0, window_bounds = array<i64: 12, 256>}, {pipeline_mode = #tpu.pipeline_mode<synchronous>, transform_indices = @transform_1, window_bounds = array<i64: 64, 12>}, {pipeline_mode = #tpu.pipeline_mode<synchronous>, transform_indices = @transform_2, window_bounds = array<i64: 64, 1>}, {pipeline_mode = #tpu.pipeline_mode<synchronous>, transform_indices = @transform_3, window_bounds = array<i64: 3, 64, 64>}, {pipeline_mode = #tpu.pipeline_mode<synchronous>, transform_indices = @transform_4, window_bounds = array<i64: 3, 64, 1>}, {pipeline_mode = #tpu.pipeline_mode<synchronous>, transform_indices = @transform_5, window_bounds = array<i64: 1, 64>}, {transform_indices = @transform_6, window_bounds = array<i64: 1>}, {transform_indices = @transform_7, window_bounds = array<i64: 1, 256>}]} {
    %c0 = arith.constant 0 : index
    %c0_0 = arith.constant 0 : index
    %0 = vector.load %arg2[%c0, %c0_0] : memref<64x12xbf16, #tpu.memory_space<vmem>>, vector<64x12xbf16>
    %c0_1 = arith.constant 0 : index
    %c0_2 = arith.constant 0 : index
    %1 = vector.load %arg1[%c0_1, %c0_2] : memref<12x256xbf16, #tpu.memory_space<vmem>>, vector<12x256xbf16>
    %cst = arith.constant dense<0.000000e+00> : vector<64x256xf32>
    %2 = tpu.matmul %0, %1, %cst {dimension_numbers = #tpu.dot_dimension_numbers<[1], [0], [0], [1], [0, 0, 1, 1], [], []>} : vector<64x12xbf16>, vector<12x256xbf16>, vector<64x256xf32> -> vector<64x256xf32>
    %c0_3 = arith.constant 0 : index
    %c0_4 = arith.constant 0 : index
    %3 = vector.load %arg3[%c0_3, %c0_4] : memref<64x1xf32, #tpu.memory_space<vmem>>, vector<64x1xf32>
    %4 = vector.broadcast %3 : vector<64x1xf32> to vector<64x256xf32>
    %5 = arith.addf %2, %4 : vector<64x256xf32>
    %cst_5 = arith.constant 0.000000e+00 : f32
    %6 = vector.broadcast %cst_5 : f32 to vector<64x256xf32>
    %7 = arith.maximumf %5, %6 : vector<64x256xf32>
    %c0_6 = arith.constant 0 : index
    %c0_7 = arith.constant 0 : index
    %c0_8 = arith.constant 0 : index
    %8 = vector.load %arg4[%c0_6, %c0_7, %c0_8] : memref<3x64x64xbf16, #tpu.memory_space<vmem>>, vector<1x64x64xbf16>
    %9 = vector.shape_cast %8 : vector<1x64x64xbf16> to vector<64x64xbf16>
    %10 = arith.truncf %7 : vector<64x256xf32> to vector<64x256xbf16>
    %cst_9 = arith.constant dense<0.000000e+00> : vector<64x256xf32>
    %11 = tpu.matmul %9, %10, %cst_9 {dimension_numbers = #tpu.dot_dimension_numbers<[1], [0], [0], [1], [0, 0, 1, 1], [], []>} : vector<64x64xbf16>, vector<64x256xbf16>, vector<64x256xf32> -> vector<64x256xf32>
    %c0_10 = arith.constant 0 : index
    %c0_11 = arith.constant 0 : index
    %c0_12 = arith.constant 0 : index
    %12 = vector.load %arg5[%c0_10, %c0_11, %c0_12] : memref<3x64x1xf32, #tpu.memory_space<vmem>>, vector<1x64x1xf32>
    %13 = vector.shape_cast %12 : vector<1x64x1xf32> to vector<64x1xf32>
    %14 = vector.broadcast %13 : vector<64x1xf32> to vector<64x256xf32>
    %15 = arith.addf %11, %14 : vector<64x256xf32>
    %cst_13 = arith.constant 0.000000e+00 : f32
    %16 = vector.broadcast %cst_13 : f32 to vector<64x256xf32>
    %17 = arith.maximumf %15, %16 : vector<64x256xf32>
    %c1 = arith.constant 1 : index
    %c0_14 = arith.constant 0 : index
    %c0_15 = arith.constant 0 : index
    %18 = vector.load %arg4[%c1, %c0_14, %c0_15] : memref<3x64x64xbf16, #tpu.memory_space<vmem>>, vector<1x64x64xbf16>
    %19 = vector.shape_cast %18 : vector<1x64x64xbf16> to vector<64x64xbf16>
    %20 = arith.truncf %17 : vector<64x256xf32> to vector<64x256xbf16>
    %cst_16 = arith.constant dense<0.000000e+00> : vector<64x256xf32>
    %21 = tpu.matmul %19, %20, %cst_16 {dimension_numbers = #tpu.dot_dimension_numbers<[1], [0], [0], [1], [0, 0, 1, 1], [], []>} : vector<64x64xbf16>, vector<64x256xbf16>, vector<64x256xf32> -> vector<64x256xf32>
    %c1_17 = arith.constant 1 : index
    %c0_18 = arith.constant 0 : index
    %c0_19 = arith.constant 0 : index
    %22 = vector.load %arg5[%c1_17, %c0_18, %c0_19] : memref<3x64x1xf32, #tpu.memory_space<vmem>>, vector<1x64x1xf32>
    %23 = vector.shape_cast %22 : vector<1x64x1xf32> to vector<64x1xf32>
    %24 = vector.broadcast %23 : vector<64x1xf32> to vector<64x256xf32>
    %25 = arith.addf %21, %24 : vector<64x256xf32>
    %cst_20 = arith.constant 0.000000e+00 : f32
    %26 = vector.broadcast %cst_20 : f32 to vector<64x256xf32>
    %27 = arith.maximumf %25, %26 : vector<64x256xf32>
    %c2 = arith.constant 2 : index
    %c0_21 = arith.constant 0 : index
    %c0_22 = arith.constant 0 : index
    %28 = vector.load %arg4[%c2, %c0_21, %c0_22] : memref<3x64x64xbf16, #tpu.memory_space<vmem>>, vector<1x64x64xbf16>
    %29 = vector.shape_cast %28 : vector<1x64x64xbf16> to vector<64x64xbf16>
    %30 = arith.truncf %27 : vector<64x256xf32> to vector<64x256xbf16>
    %cst_23 = arith.constant dense<0.000000e+00> : vector<64x256xf32>
    %31 = tpu.matmul %29, %30, %cst_23 {dimension_numbers = #tpu.dot_dimension_numbers<[1], [0], [0], [1], [0, 0, 1, 1], [], []>} : vector<64x64xbf16>, vector<64x256xbf16>, vector<64x256xf32> -> vector<64x256xf32>
    %c2_24 = arith.constant 2 : index
    %c0_25 = arith.constant 0 : index
    %c0_26 = arith.constant 0 : index
    %32 = vector.load %arg5[%c2_24, %c0_25, %c0_26] : memref<3x64x1xf32, #tpu.memory_space<vmem>>, vector<1x64x1xf32>
    %33 = vector.shape_cast %32 : vector<1x64x1xf32> to vector<64x1xf32>
    %34 = vector.broadcast %33 : vector<64x1xf32> to vector<64x256xf32>
    %35 = arith.addf %31, %34 : vector<64x256xf32>
    %cst_27 = arith.constant 0.000000e+00 : f32
    %36 = vector.broadcast %cst_27 : f32 to vector<64x256xf32>
    %37 = arith.maximumf %35, %36 : vector<64x256xf32>
    %c0_28 = arith.constant 0 : index
    %c0_29 = arith.constant 0 : index
    %38 = vector.load %arg6[%c0_28, %c0_29] : memref<1x64xbf16, #tpu.memory_space<vmem>>, vector<1x64xbf16>
    %39 = arith.truncf %37 : vector<64x256xf32> to vector<64x256xbf16>
    %cst_30 = arith.constant dense<0.000000e+00> : vector<1x256xf32>
    %40 = tpu.matmul %38, %39, %cst_30 {dimension_numbers = #tpu.dot_dimension_numbers<[1], [0], [0], [1], [0, 0, 1, 1], [], []>} : vector<1x64xbf16>, vector<64x256xbf16>, vector<1x256xf32> -> vector<1x256xf32>
    %c0_31 = arith.constant 0 : index
    %41 = memref.load %arg7[%c0_31] : memref<1xf32, #tpu.memory_space<smem>>
    %42 = vector.broadcast %41 : f32 to vector<1x256xf32>
    %43 = arith.addf %40, %42 : vector<1x256xf32>
    %c0_32 = arith.constant 0 : index
    %c0_33 = arith.constant 0 : index
    %44 = vector.load %arg8[%c0_32, %c0_33] : memref<1x256xf32, #tpu.memory_space<vmem>>, vector<1x256xf32>
    tpu.vector_store %arg8[%c0_32, %c0_33], %43 {strides = array<i32>} : memref<1x256xf32, #tpu.memory_space<vmem>>, vector<1x256xf32>,
    return
  }
  func.func @transform_0(%arg0: i32) -> (i32, i32) {
    %c0_i32 = arith.constant 0 : i32
    %c0_i32_0 = arith.constant 0 : i32
    return %c0_i32, %arg0 : i32, i32
  }
  func.func @transform_1(%arg0: i32) -> (i32, i32) {
    %c0_i32 = arith.constant 0 : i32
    %c0_i32_0 = arith.constant 0 : i32
    %c0_i32_1 = arith.constant 0 : i32
    return %c0_i32, %c0_i32_0 : i32, i32
  }
  func.func @transform_2(%arg0: i32) -> (i32, i32) {
    %c0_i32 = arith.constant 0 : i32
    %c0_i32_0 = arith.constant 0 : i32
    %c0_i32_1 = arith.constant 0 : i32
    return %c0_i32, %c0_i32_0 : i32, i32
  }
  func.func @transform_3(%arg0: i32) -> (i32, i32, i32) {
    %c0_i32 = arith.constant 0 : i32
    %c0_i32_0 = arith.constant 0 : i32
    %c0_i32_1 = arith.constant 0 : i32
    %c0_i32_2 = arith.constant 0 : i32
    return %c0_i32, %c0_i32_0, %c0_i32_1 : i32, i32, i32
  }
  func.func @transform_4(%arg0: i32) -> (i32, i32, i32) {
    %c0_i32 = arith.constant 0 : i32
    %c0_i32_0 = arith.constant 0 : i32
    %c0_i32_1 = arith.constant 0 : i32
    %c0_i32_2 = arith.constant 0 : i32
    return %c0_i32, %c0_i32_0, %c0_i32_1 : i32, i32, i32
  }
  func.func @transform_5(%arg0: i32) -> (i32, i32) {
    %c0_i32 = arith.constant 0 : i32
    %c0_i32_0 = arith.constant 0 : i32
    %c0_i32_1 = arith.constant 0 : i32
    return %c0_i32, %c0_i32_0 : i32, i32
  }
  func.func @transform_6(%arg0: i32) -> i32 {
    %c0_i32 = arith.constant 0 : i32
    %c0_i32_0 = arith.constant 0 : i32
    return %c0_i32 : i32
  }
  func.func @transform_7(%arg0: i32) -> (i32, i32) {
    %c0_i32 = arith.constant 0 : i32
    %c0_i32_0 = arith.constant 0 : i32
    return %c0_i32, %arg0 : i32, i32
  }
}

</mosaic_0001>

<llo_original>
// kernel: binary_classification_forward.1
$region0: #{binary_classification_forward.1}
  #allocation0 [shape = 'u32[]', space=smem, size = 0x4, offset = 0x4, fixed_abs, tag = 'smem constant byte address 0x4 - core index']
  #allocation1 [shape = 'u32[144,128]{1,0:T(1,128)}', space=vmem, size = 0x12000, scoped, tag = 'internal scratch']
  #allocation2 [shape = 'f32[1]{0:T(128)S(6)}', space=smem, size = 0x200, scoped, tag = 'scoped memory for binary_classification_forward.1']
  %s0 = inlined_call_operand.vmem [shape: bf16[12,512], index: 0, kind: input, shape index: {}]
  %s1 = inlined_call_operand.vmem [shape: bf16[64,12], index: 1, kind: input, shape index: {}]
  %s2 = inlined_call_operand.vmem [shape: f32[64,1], index: 2, kind: input, shape index: {}]
  %s3 = inlined_call_operand.vmem [shape: bf16[3,64,64], index: 3, kind: input, shape index: {}]
  %s4 = inlined_call_operand.vmem [shape: f32[3,64,1], index: 4, kind: input, shape index: {}]
  %s5 = inlined_call_operand.vmem [shape: bf16[1,64], index: 5, kind: input, shape index: {}]
  %s6 = inlined_call_operand.<no memory space> [shape: f32[1], index: 6, kind: input, shape index: {}]
  %s7 = inlined_call_operand.vmem [shape: f32[1,512], index: 7, kind: output, shape index: {}]
  %s8 = sld [smem:[#allocation0]]
  $region99: #{binary_classification_forward.1} parent=0
    _
  %s10 = ssub.s32 1, %s8
  %s11 = scalar_select 0, %s10, %s8
  %12 = sst [smem:[#allocation2]] %s6
  $region1: #{binary_classification_forward.1} parent=0
    #allocation3 [shape = 'u8[16384]{0}', space=vmem, size = 0x4000, scoped, tag = 'input window, operand 0']
    loop: start=0, step=1, limit=4
    $region2: #{binary_classification_forward.1} parent=1 // loop_pre_header
      _
    $region3: #{binary_classification_forward.1} parent=1 // loop_header
      %s14 = sphi 0, %s18
      %p15 = scmp.ge.s32.totalorder %s14, 4
      %s24 = sphi 0, %s26
      %s27 = sphi 0, %s24
      %s28 = sphi 0, %s27
      %s44 = sphi 0, %s28
      %s48 = sphi 0, %s48
      %s50 = sphi 0, %s48
      %s51 = sphi 0, %s50
      %s65 = sphi 0, %s51
      %s69 = sphi 0, %s69
      %s71 = sphi 0, %s69
      %s72 = sphi 0, %s71
      %s86 = sphi 0, %s72
      %s90 = sphi 0, %s90
      %s92 = sphi 0, %s90
      %s93 = sphi 0, %s92
      %s107 = sphi 0, %s93
      %s111 = sphi 0, %s111
      %s113 = sphi 0, %s111
      %s114 = sphi 0, %s113
      %s128 = sphi 0, %s114
      %s132 = sphi 0, %s132
      %s134 = sphi 0, %s132
      %s135 = sphi 0, %s134
      %s149 = sphi 0, %s135
      %s153 = sphi 0, %s153
      %s155 = sphi 0, %s153
      %s156 = sphi 0, %s155
      %s170 = sphi 0, %s156
      %s176 = sphi 0, %s178
      %s179 = sphi 0, %s176
      %s180 = sphi 0, %s179
      %s196 = sphi 0, %s180
    $region4: #{binary_classification_forward.1} parent=1 // loop_header_branch
      %17 = sbr.rel (%p15) target = $region8
    $region5: #{binary_classification_forward.1} parent=1 // loop_body
      %s19 = ssub.s32 %s14, 1
      %s20 = ssub.s32 %s14, 2
      %s21 = sadd.s32 %s14, 1
      %s22 = ssub.s32 %s14, %s21
      %p23 = scmp.eq.s32.totalorder %s22, 0
      %s25 = sadd.s32 %s24, 1
      %s26 = scalar_select %p23, %s24, %s25
      %p29 = pneg %p23
      %p30 = scmp.eq.s32.totalorder %s14, 1
      %p31 = por %p29, %p30
      %p32 = scmp.ne.s32.totalorder %s24, %s27
      %p33 = scmp.eq.s32.totalorder %s14, 0
      %p34 = por %p32, %p33
      %p35 = scmp.ne.s32.totalorder %s24, %s27
      %p36 = scmp.eq.s32.totalorder %s19, 1
      %p37 = por %p35, %p36
      %p38 = scmp.ne.s32.totalorder %s27, %s28
      %p39 = scmp.eq.s32.totalorder %s19, 0
      %p40 = por %p38, %p39
      %p41 = scmp.ne.s32.totalorder %s27, %s28
      %p42 = scmp.eq.s32.totalorder %s20, 1
      %p43 = por %p41, %p42
      %p45 = scmp.ne.s32.totalorder %s28, %s44
      %p46 = scmp.eq.s32.totalorder %s20, 0
      %p47 = por %p45, %p46
      %s49 = sadd.s32 %s48, 1
      %p52 = scmp.eq.s32.totalorder %s14, 1
      %p53 = scmp.ne.s32.totalorder %s48, %s50
      %p54 = scmp.eq.s32.totalorder %s14, 0
      %p55 = por %p53, %p54
      %p56 = scmp.ne.s32.totalorder %s48, %s50
      %p57 = scmp.eq.s32.totalorder %s19, 1
      %p58 = por %p56, %p57
      %p59 = scmp.ne.s32.totalorder %s50, %s51
      %p60 = scmp.eq.s32.totalorder %s19, 0
      %p61 = por %p59, %p60
      %p62 = scmp.ne.s32.totalorder %s50, %s51
      %p63 = scmp.eq.s32.totalorder %s20, 1
      %p64 = por %p62, %p63
      %p66 = scmp.ne.s32.totalorder %s51, %s65
      %p67 = scmp.eq.s32.totalorder %s20, 0
      %p68 = por %p66, %p67
      %s70 = sadd.s32 %s69, 1
      %p73 = scmp.eq.s32.totalorder %s14, 1
      %p74 = scmp.ne.s32.totalorder %s69, %s71
      %p75 = scmp.eq.s32.totalorder %s14, 0
      %p76 = por %p74, %p75
      %p77 = scmp.ne.s32.totalorder %s69, %s71
      %p78 = scmp.eq.s32.totalorder %s19, 1
      %p79 = por %p77, %p78
      %p80 = scmp.ne.s32.totalorder %s71, %s72
      %p81 = scmp.eq.s32.totalorder %s19, 0
      %p82 = por %p80, %p81
      %p83 = scmp.ne.s32.totalorder %s71, %s72
      %p84 = scmp.eq.s32.totalorder %s20, 1
      %p85 = por %p83, %p84
      %p87 = scmp.ne.s32.totalorder %s72, %s86
      %p88 = scmp.eq.s32.totalorder %s20, 0
      %p89 = por %p87, %p88
      %s91 = sadd.s32 %s90, 1
      %p94 = scmp.eq.s32.totalorder %s14, 1
      %p95 = scmp.ne.s32.totalorder %s90, %s92
      %p96 = scmp.eq.s32.totalorder %s14, 0
      %p97 = por %p95, %p96
      %p98 = scmp.ne.s32.totalorder %s90, %s92
      %p99 = scmp.eq.s32.totalorder %s19, 1
      %p100 = por %p98, %p99
      %p101 = scmp.ne.s32.totalorder %s92, %s93
      %p102 = scmp.eq.s32.totalorder %s19, 0
      %p103 = por %p101, %p102
      %p104 = scmp.ne.s32.totalorder %s92, %s93
      %p105 = scmp.eq.s32.totalorder %s20, 1
      %p106 = por %p104, %p105
      %p108 = scmp.ne.s32.totalorder %s93, %s107
      %p109 = scmp.eq.s32.totalorder %s20, 0
      %p110 = por %p108, %p109
      %s112 = sadd.s32 %s111, 1
      %p115 = scmp.eq.s32.totalorder %s14, 1
      %p116 = scmp.ne.s32.totalorder %s111, %s113
      %p117 = scmp.eq.s32.totalorder %s14, 0
      %p118 = por %p116, %p117
      %p119 = scmp.ne.s32.totalorder %s111, %s113
      %p120 = scmp.eq.s32.totalorder %s19, 1
      %p121 = por %p119, %p120
      %p122 = scmp.ne.s32.totalorder %s113, %s114
      %p123 = scmp.eq.s32.totalorder %s19, 0
      %p124 = por %p122, %p123
      %p125 = scmp.ne.s32.totalorder %s113, %s114
      %p126 = scmp.eq.s32.totalorder %s20, 1
      %p127 = por %p125, %p126
      %p129 = scmp.ne.s32.totalorder %s114, %s128
      %p130 = scmp.eq.s32.totalorder %s20, 0
      %p131 = por %p129, %p130
      %s133 = sadd.s32 %s132, 1
      %p136 = scmp.eq.s32.totalorder %s14, 1
      %p137 = scmp.ne.s32.totalorder %s132, %s134
      %p138 = scmp.eq.s32.totalorder %s14, 0
      %p139 = por %p137, %p138
      %p140 = scmp.ne.s32.totalorder %s132, %s134
      %p141 = scmp.eq.s32.totalorder %s19, 1
      %p142 = por %p140, %p141
      %p143 = scmp.ne.s32.totalorder %s134, %s135
      %p144 = scmp.eq.s32.totalorder %s19, 0
      %p145 = por %p143, %p144
      %p146 = scmp.ne.s32.totalorder %s134, %s135
      %p147 = scmp.eq.s32.totalorder %s20, 1
      %p148 = por %p146, %p147
      %p150 = scmp.ne.s32.totalorder %s135, %s149
      %p151 = scmp.eq.s32.totalorder %s20, 0
      %p152 = por %p150, %p151
      %s154 = sadd.s32 %s153, 1
      %p157 = scmp.eq.s32.totalorder %s14, 1
      %p158 = scmp.ne.s32.totalorder %s153, %s155
      %p159 = scmp.eq.s32.totalorder %s14, 0
      %p160 = por %p158, %p159
      %p161 = scmp.ne.s32.totalorder %s153, %s155
      %p162 = scmp.eq.s32.totalorder %s19, 1
      %p163 = por %p161, %p162
      %p164 = scmp.ne.s32.totalorder %s155, %s156
      %p165 = scmp.eq.s32.totalorder %s19, 0
      %p166 = por %p164, %p165
      %p167 = scmp.ne.s32.totalorder %s155, %s156
      %p168 = scmp.eq.s32.totalorder %s20, 1
      %p169 = por %p167, %p168
      %p171 = scmp.ne.s32.totalorder %s156, %s170
      %p172 = scmp.eq.s32.totalorder %s20, 0
      %p173 = por %p171, %p172
      %s174 = ssub.s32 %s14, %s21
      %p175 = scmp.eq.s32.totalorder %s174, 0
      %s177 = sadd.s32 %s176, 1
      %s178 = scalar_select %p175, %s176, %s177
      %p181 = pneg %p175
      %p182 = scmp.eq.s32.totalorder %s14, 1
      %p183 = por %p181, %p182
      %p184 = scmp.ne.s32.totalorder %s176, %s179
      %p185 = scmp.eq.s32.totalorder %s14, 0
      %p186 = por %p184, %p185
      %p187 = scmp.ne.s32.totalorder %s176, %s179
      %p188 = scmp.eq.s32.totalorder %s19, 1
      %p189 = por %p187, %p188
      %p190 = scmp.ne.s32.totalorder %s179, %s180
      %p191 = scmp.eq.s32.totalorder %s19, 0
      %p192 = por %p190, %p191
      %p193 = scmp.ne.s32.totalorder %s179, %s180
      %p194 = scmp.eq.s32.totalorder %s20, 1
      %p195 = por %p193, %p194
      %p197 = scmp.ne.s32.totalorder %s180, %s196
      %p198 = scmp.eq.s32.totalorder %s20, 0
      %p199 = por %p197, %p198
      %p200 = scmp.le.s32.totalorder 1, %s14
      %p201 = scmp.lt.s32.totalorder %s14, 3
      %p202 = pnand %p200, %p201
      %p203 = pneg %p202
      // Predicated region
      $region9: #{binary_classification_forward.1} parent=5 // pred_check
        _
      $region10: #{binary_classification_forward.1} parent=5 // pred_check_branch
        %205 = sbr.rel (%p202) target = $region12
      $region11: #{binary_classification_forward.1} parent=5 // pred_region
        %s206 = ssub.s32 %s14, 1
        // Predicated region
        $region13: #{binary_classification_forward.1} parent=11 // pred_check
          %p207 = pneg %p61
        $region14: #{binary_classification_forward.1} parent=11 // pred_check_branch
          %209 = sbr.rel (%p207) target = $region16
        $region15: #{binary_classification_forward.1} parent=11 // pred_region
          _
        $region16: #{binary_classification_forward.1} parent=11 // pred_fallthru
          _
        // Predicated region
        $region17: #{binary_classification_forward.1} parent=11 // pred_check
          %p210 = pneg %p82
        $region18: #{binary_classification_forward.1} parent=11 // pred_check_branch
          %212 = sbr.rel (%p210) target = $region20
        $region19: #{binary_classification_forward.1} parent=11 // pred_region
          _
        $region20: #{binary_classification_forward.1} parent=11 // pred_fallthru
          _
        // Predicated region
        $region21: #{binary_classification_forward.1} parent=11 // pred_check
          %p213 = pneg %p103
        $region22: #{binary_classification_forward.1} parent=11 // pred_check_branch
          %215 = sbr.rel (%p213) target = $region24
        $region23: #{binary_classification_forward.1} parent=11 // pred_region
          _
        $region24: #{binary_classification_forward.1} parent=11 // pred_fallthru
          _
        // Predicated region
        $region25: #{binary_classification_forward.1} parent=11 // pred_check
          %p216 = pneg %p124
        $region26: #{binary_classification_forward.1} parent=11 // pred_check_branch
          %218 = sbr.rel (%p216) target = $region28
        $region27: #{binary_classification_forward.1} parent=11 // pred_region
          _
        $region28: #{binary_classification_forward.1} parent=11 // pred_fallthru
          _
        // Predicated region
        $region29: #{binary_classification_forward.1} parent=11 // pred_check
          %p219 = pneg %p145
        $region30: #{binary_classification_forward.1} parent=11 // pred_check_branch
          %221 = sbr.rel (%p219) target = $region32
        $region31: #{binary_classification_forward.1} parent=11 // pred_region
          _
        $region32: #{binary_classification_forward.1} parent=11 // pred_fallthru
          _
        // Predicated region
        $region33: #{binary_classification_forward.1} parent=11 // pred_check
          %p222 = pneg %p166
        $region34: #{binary_classification_forward.1} parent=11 // pred_check_branch
          %224 = sbr.rel (%p222) target = $region36
        $region35: #{binary_classification_forward.1} parent=11 // pred_region
          _
        $region36: #{binary_classification_forward.1} parent=11 // pred_fallthru
          _
      $region12: #{binary_classification_forward.1} parent=5 // pred_fallthru
        _
      %p225 = scmp.lt.s32.totalorder %s14, 2
      // Predicated region
      $region37: #{binary_classification_forward.1} parent=5 // pred_check
        %p226 = pneg %p225
      $region38: #{binary_classification_forward.1} parent=5 // pred_check_branch
        %228 = sbr.rel (%p226) target = $region40
      $region39: #{binary_classification_forward.1} parent=5 // pred_region
        // Predicated region
        $region41: #{binary_classification_forward.1} parent=39 // pred_check
          %p229 = pneg %p34
        $region42: #{binary_classification_forward.1} parent=39 // pred_check_branch
          %231 = sbr.rel (%p229) target = $region44
        $region43: #{binary_classification_forward.1} parent=39 // pred_region
          %s232 = sand.u32 %s24, 1
          %s233 = sand.u32 %s24, 1
          %s234 = smul.addr %s233, 16
          %s235 = scalar_lea.vmem [#allocation3], %s234
          %s236 = smul.u32 2, %s14
          %s237 = smul.addr %s236, 4
          %s238 = scalar_lea.vmem %s0, %s237
          // Predicated region
          $region45: #{binary_classification_forward.1} parent=43 // pred_check
            _
          $region46: #{binary_classification_forward.1} parent=43 // pred_check_branch
            %240 = sbr.rel (0) target = $region48
          $region47: #{binary_classification_forward.1} parent=43 // pred_region
            // Predicated region
            $region49: #{binary_classification_forward.1} parent=47 // pred_check
              _
            $region50: #{binary_classification_forward.1} parent=47 // pred_check_branch
              %242 = sbr.rel (0) target = $region52
            $region51: #{binary_classification_forward.1} parent=47 // pred_region
              // Predicated region
              $region64: #{binary_classification_forward.1} parent=51 // pred_check
                _
              $region65: #{binary_classification_forward.1} parent=51 // pred_check_branch
                %259 = sbr.rel (0) target = $region67
              $region66: #{binary_classification_forward.1} parent=51 // pred_region
                loop: start=0, step=1, limit=1
                $region68: #{binary_classification_forward.1} parent=66 // loop_pre_header
                  _
                $region69: #{binary_classification_forward.1} parent=66 // loop_header
                  %s261 = sphi 0, %s265
                  %p262 = scmp.ge.s32.totalorder %s261, 1
                  %s266 = sphi %s238, %s238
                  %s267 = sphi %s235, %s235
                $region70: #{binary_classification_forward.1} parent=66 // loop_header_branch
                  %264 = sbr.rel (%p262) target = $region74
                $region71: #{binary_classification_forward.1} parent=66 // loop_body
                  %v268 = vld [vmem:[%s266] sm:$0xff]
                  %269 = vst [vmem:[%s267] sm:$0xff] %v268
                  %v270 = vld [vmem:[%s266 + $0x10] sm:$0xff]
                  %271 = vst [vmem:[%s267 + $0x8] sm:$0xff] %v270
                $region72: #{binary_classification_forward.1} parent=66 // loop_footer
                  %s265 = sadd.s32 1, %s261
                $region73: #{binary_classification_forward.1} parent=66 // loop_footer_branch
                  %260 = sbr.rel target = $region69
                $region74: #{binary_classification_forward.1} parent=66 // loop_exit
                  _
              $region67: #{binary_classification_forward.1} parent=51 // pred_fallthru
                _
              // Predicated region
              $region75: #{binary_classification_forward.1} parent=51 // pred_check
                _
              $region76: #{binary_classification_forward.1} parent=51 // pred_check_branch
                %273 = sbr.rel target = $region78
              $region77: #{binary_classification_forward.1} parent=51 // pred_region
                _
              $region78: #{binary_classification_forward.1} parent=51 // pred_fallthru
                _
            $region52: #{binary_classification_forward.1} parent=47 // pred_fallthru
              _
            // Predicated region
            $region53: #{binary_classification_forward.1} parent=47 // pred_check
              _
            $region54: #{binary_classification_forward.1} parent=47 // pred_check_branch
              %244 = sbr.rel target = $region56
            $region55: #{binary_classification_forward.1} parent=47 // pred_region
              loop: start=0, step=1, limit=1
              $region57: #{binary_classification_forward.1} parent=55 // loop_pre_header
                _
              $region58: #{binary_classification_forward.1} parent=55 // loop_header
                %s247 = sphi 0, %s251
                %p248 = scmp.ge.s32.totalorder %s247, 1
                %s252 = sphi %s238, %s238
                %s253 = sphi %s235, %s235
              $region59: #{binary_classification_forward.1} parent=55 // loop_header_branch
                %250 = sbr.rel (%p248) target = $region63
              $region60: #{binary_classification_forward.1} parent=55 // loop_body
                %v254 = vld [vmem:[%s252] sm:$0xff]
                %255 = vst [vmem:[%s253] sm:$0xff] %v254
                %v256 = vld [vmem:[%s252 + $0x10] sm:$0xff]
                %257 = vst [vmem:[%s253 + $0x8] sm:$0xff] %v256
              $region61: #{binary_classification_forward.1} parent=55 // loop_footer
                %s251 = sadd.s32 1, %s247
              $region62: #{binary_classification_forward.1} parent=55 // loop_footer_branch
                %246 = sbr.rel target = $region58
              $region63: #{binary_classification_forward.1} parent=55 // loop_exit
                _
            $region56: #{binary_classification_forward.1} parent=47 // pred_fallthru
              _
          $region48: #{binary_classification_forward.1} parent=43 // pred_fallthru
            _
          %274 = vnop
        $region44: #{binary_classification_forward.1} parent=39 // pred_fallthru
          _
      $region40: #{binary_classification_forward.1} parent=5 // pred_fallthru
        _
      %p275 = scmp.le.s32.totalorder 1, %s14
      %p276 = scmp.lt.s32.totalorder %s14, 3
      %p277 = pnand %p275, %p276
      %p278 = pneg %p277
      // Predicated region
      $region79: #{binary_classification_forward.1} parent=5 // pred_check
        _
      $region80: #{binary_classification_forward.1} parent=5 // pred_check_branch
        %280 = sbr.rel (%p277) target = $region82
      $region81: #{binary_classification_forward.1} parent=5 // pred_region
        %s281 = ssub.s32 %s14, 1
        %s282 = sand.u32 %s27, 1
        %s283 = sand.u32 %s27, 1
        %s284 = smul.addr %s283, 16
        %s285 = scalar_lea.vmem [#allocation3], %s284
        // Predicated region
        $region83: #{binary_classification_forward.1} parent=81 // pred_check
          %p286 = pneg %p40
        $region84: #{binary_classification_forward.1} parent=81 // pred_check_branch
          %288 = sbr.rel (%p286) target = $region86
        $region85: #{binary_classification_forward.1} parent=81 // pred_region
          _
        $region86: #{binary_classification_forward.1} parent=81 // pred_fallthru
          _
        %s289 = sand.u32 %s27, 1
        %s290 = sand.u32 %s27, 1
        %s291 = smul.addr %s290, 16
        %s292 = scalar_lea.vmem [#allocation3], %s291
        %p293 = pneg %p40
        %p294 = pneg %p37
        %p295 = pneg %p61
        %p296 = pneg %p58
        %p297 = pneg %p82
        %p298 = pneg %p79
        %p299 = pneg %p103
        %p300 = pneg %p100
        %p301 = pneg %p124
        %p302 = pneg %p121
        %p303 = pneg %p145
        %p304 = pneg %p142
        %p305 = pneg %p166
        %p306 = pneg %p163
        %p307 = pneg %p192
        %p308 = pneg %p189
        %s309 = smul.u32 2, %s19
        %p310 = scmp.lt.s32.totalorder %s309, 3
        %s311 = scalar_select %p310, %s309, 3
        %s312 = scalar_lea.vmem %s7, %s311
        %s313 = smul.u32 2, %s19
        %s314 = smul.u32 2, %s19
        %p315 = scmp.lt.s32.totalorder %s314, 3
        %s316 = scalar_select %p315, %s314, 3
        %s317 = scalar_lea.vmem %s7, %s316
        %s318 = smul.u32 2, %s19
        %v320 = vld [vmem:[%s1] sm:$0xf]
        %v321 = vld [vmem:[%s1 + $0x4] sm:$0xf]
        %v322 = vld [vmem:[%s1 + $0x8] sm:$0xf]
        %v323 = vld [vmem:[%s1 + $0xc] sm:$0xf]
        %v324 = vld [vmem:[%s1 + $0x10] sm:$0xf]
        %v325 = vld [vmem:[%s1 + $0x14] sm:$0xf]
        %v326 = vld [vmem:[%s1 + $0x18] sm:$0xf]
        %v327 = vld [vmem:[%s1 + $0x1c] sm:$0xf]
        %v328 = vld [vmem:[%s285] sm:$0xff]
        %v329 = vld [vmem:[%s285 + $0x8] sm:$0x33]
        %v330 = vld [vmem:[%s2] sm:$0xff]
        %v331 = vld [vmem:[%s2 + $0x8] sm:$0xff]
        %v332 = vld [vmem:[%s2 + $0x10] sm:$0xff]
        %v333 = vld [vmem:[%s2 + $0x18] sm:$0xff]
        %v334 = vld [vmem:[%s2 + $0x20] sm:$0xff]
        %v335 = vld [vmem:[%s2 + $0x28] sm:$0xff]
        %v336 = vld [vmem:[%s2 + $0x30] sm:$0xff]
        %v337 = vld [vmem:[%s2 + $0x38] sm:$0xff]
        %339 = vset.pattern.permute.xlu0 0
        %340 = vperm.xlu0 %339, %v330
        %v341 = vpop.permute.xlu0 %340
        %344 = vset.pattern.permute.xlu0 0
        %345 = vperm.xlu0 %344, %v331
        %v346 = vpop.permute.xlu0 %345
        %349 = vset.pattern.permute.xlu0 0
        %350 = vperm.xlu0 %349, %v332
        %v351 = vpop.permute.xlu0 %350
        %354 = vset.pattern.permute.xlu0 0
        %355 = vperm.xlu0 %354, %v333
        %v356 = vpop.permute.xlu0 %355
        %359 = vset.pattern.permute.xlu0 0
        %360 = vperm.xlu0 %359, %v334
        %v361 = vpop.permute.xlu0 %360
        %364 = vset.pattern.permute.xlu0 0
        %365 = vperm.xlu0 %364, %v335
        %v366 = vpop.permute.xlu0 %365
        %369 = vset.pattern.permute.xlu0 0
        %370 = vperm.xlu0 %369, %v336
        %v371 = vpop.permute.xlu0 %370
        %374 = vset.pattern.permute.xlu0 0
        %375 = vperm.xlu0 %374, %v337
        %v376 = vpop.permute.xlu0 %375
        %v386 = vunpack.c.l.b16 %v320
        %v387 = vunpack.c.l.b16 %v321
        %v388 = vunpack.c.l.b16 %v322
        %v389 = vunpack.c.l.b16 %v323
        %v390 = vunpack.c.l.b16 %v324
        %v391 = vunpack.c.l.b16 %v325
        %v392 = vunpack.c.l.b16 %v326
        %v393 = vunpack.c.l.b16 %v327
        %v394 = vpack.c.b16 %v387, %v386
        %v395 = vpack.c.b16 %v389, %v388
        %v396 = vpack.c.b16 %v391, %v390
        %v397 = vpack.c.b16 %v393, %v392
        %v400 = vunpack.c.l.b16 %v328
        %v401 = vunpack.c.h.b16 %v328
        %v402 = vunpack.c.l.b16 %v329
        %v403 = vunpack.c.h.b16 %v329
        %v404 = vpack.c.b16 %v402, %v400
        %v405 = vpack.c.b16 %v403, %v401
        %vm406 = vcmask 97280
        %v408 = vsel %vm406, %v394, 0
        %v411 = vsel %vm406, %v395, 0
        %v414 = vsel %vm406, %v396, 0
        %v417 = vsel %vm406, %v397, 0
        %vm419 = vcmask 1045504
        %v421 = vsel %vm419, %v404, 0
        %v424 = vsel %vm419, %v405, 0
        %426 = vmatprep.subr.bf16.mxu0 %v424
        %427 = vmatpush1.bf16.msra.mxu0 %v421
        %428 = vmatprep.subr.bf16.mxu0 0
        %429 = vmatpush1.bf16.msra.mxu0 0
        %430 = vmatprep.subr.bf16.mxu0 0
        %431 = vmatpush1.bf16.msra.mxu0 0
        %432 = vmatprep.subr.bf16.mxu0 0
        %433 = vmatpush1.bf16.msra.mxu0 0
        %434 = vmatprep.subr.bf16.mxu0 0
        %435 = vmatpush1.bf16.msra.mxu0 0
        %436 = vmatprep.subr.bf16.mxu0 0
        %437 = vmatpush1.bf16.msra.mxu0 0
        %438 = vmatprep.subr.bf16.mxu0 0
        %439 = vmatpush1.bf16.msra.mxu0 0
        %440 = vmatprep.subr.bf16.mxu0 0
        %441 = vmatpush1.bf16.msra.mxu0 0
        %442 = vmatprep.subr.bf16.mxu0 0
        %443 = vmatpush1.bf16.msra.mxu0 0
        %444 = vmatprep.subr.bf16.mxu0 0
        %445 = vmatpush1.bf16.msra.mxu0 0
        %446 = vmatprep.subr.bf16.mxu0 0
        %447 = vmatpush1.bf16.msra.mxu0 0
        %448 = vmatprep.subr.bf16.mxu0 0
        %449 = vmatpush1.bf16.msra.mxu0 0
        %450 = vmatprep.subr.bf16.mxu0 0
        %451 = vmatpush1.bf16.msra.mxu0 0
        %452 = vmatprep.subr.bf16.mxu0 0
        %453 = vmatpush1.bf16.msra.mxu0 0
        %454 = vmatprep.subr.bf16.mxu0 0
        %455 = vmatpush1.bf16.msra.mxu0 0
        %456 = vmatprep.subr.bf16.mxu0 0
        %457 = vmatpush1.bf16.msra.mxu0 0
        %458 = vmatprep.mubr.bf16.mxu0 0
        %459 = vmatmul.mubr.bf16.gmra.mrb[0].mxu0 %v408
        %v460 = vpop.f32.mrb[0].mxu0
        %v461 = vadd.f32 %v341, %v460
        %v462 = vpop.f32.mrb[0].mxu0
        %v463 = vadd.f32 %v341, %v462
        %v464 = vpop.f32.mrb[0].mxu0
        %v465 = vadd.f32 %v346, %v464
        %v466 = vpop.f32.mrb[0].mxu0
        %v467 = vadd.f32 %v346, %v466
        %468 = vmatprep.mubr.bf16.mxu0 0
        %469 = vmatmul.mubr.bf16.gmra.mrb[0].mxu0 %v411
        %v470 = vpop.f32.mrb[0].mxu0
        %v471 = vadd.f32 %v351, %v470
        %v472 = vpop.f32.mrb[0].mxu0
        %v473 = vadd.f32 %v351, %v472
        %v474 = vpop.f32.mrb[0].mxu0
        %v475 = vadd.f32 %v356, %v474
        %v476 = vpop.f32.mrb[0].mxu0
        %v477 = vadd.f32 %v356, %v476
        %478 = vmatprep.mubr.bf16.mxu0 0
        %479 = vmatmul.mubr.bf16.gmra.mrb[0].mxu0 %v414
        %v480 = vpop.f32.mrb[0].mxu0
        %v481 = vadd.f32 %v361, %v480
        %v482 = vpop.f32.mrb[0].mxu0
        %v483 = vadd.f32 %v361, %v482
        %v484 = vpop.f32.mrb[0].mxu0
        %v485 = vadd.f32 %v366, %v484
        %v486 = vpop.f32.mrb[0].mxu0
        %v487 = vadd.f32 %v366, %v486
        %488 = vmatprep.mubr.bf16.mxu0 0
        %489 = vmatmul.mubr.bf16.gmra.mrb[0].mxu0 %v417
        %v490 = vpop.f32.mrb[0].mxu0
        %v491 = vadd.f32 %v371, %v490
        %v492 = vpop.f32.mrb[0].mxu0
        %v493 = vadd.f32 %v371, %v492
        %v494 = vpop.f32.mrb[0].mxu0
        %v495 = vadd.f32 %v376, %v494
        %v496 = vpop.f32.mrb[0].mxu0
        %v497 = vadd.f32 %v376, %v496
        %498 = vdwg.mxu0
        %v499 = vmax.f32 %v461, 0.0
        %v500 = vmax.f32 %v463, 0.0
        %v501 = vmax.f32 %v465, 0.0
        %v502 = vmax.f32 %v467, 0.0
        %v503 = vmax.f32 %v471, 0.0
        %v504 = vmax.f32 %v473, 0.0
        %v505 = vmax.f32 %v475, 0.0
        %v506 = vmax.f32 %v477, 0.0
        %v507 = vmax.f32 %v481, 0.0
        %v508 = vmax.f32 %v483, 0.0
        %v509 = vmax.f32 %v485, 0.0
        %v510 = vmax.f32 %v487, 0.0
        %v511 = vmax.f32 %v491, 0.0
        %v512 = vmax.f32 %v493, 0.0
        %v513 = vmax.f32 %v495, 0.0
        %v514 = vmax.f32 %v497, 0.0
        %v515 = vld [vmem:[%s3] sm:$0xf]
        %v516 = vld [vmem:[%s3 + $0x4] sm:$0xf]
        %v517 = vld [vmem:[%s3 + $0x8] sm:$0xf]
        %v518 = vld [vmem:[%s3 + $0xc] sm:$0xf]
        %v519 = vld [vmem:[%s3 + $0x10] sm:$0xf]
        %v520 = vld [vmem:[%s3 + $0x14] sm:$0xf]
        %v521 = vld [vmem:[%s3 + $0x18] sm:$0xf]
        %v522 = vld [vmem:[%s3 + $0x1c] sm:$0xf]
        %v523 = vpack.c.bf16 %v501, %v499
        %v524 = vpack.c.bf16 %v502, %v500
        %v525 = vpack.c.bf16 %v505, %v503
        %v526 = vpack.c.bf16 %v506, %v504
        %v527 = vpack.c.bf16 %v509, %v507
        %v528 = vpack.c.bf16 %v510, %v508
        %v529 = vpack.c.bf16 %v513, %v511
        %v530 = vpack.c.bf16 %v514, %v512
        %v531 = vld [vmem:[%s4] sm:$0xff]
        %v532 = vld [vmem:[%s4 + $0x8] sm:$0xff]
        %v533 = vld [vmem:[%s4 + $0x10] sm:$0xff]
        %v534 = vld [vmem:[%s4 + $0x18] sm:$0xff]
        %v535 = vld [vmem:[%s4 + $0x20] sm:$0xff]
        %v536 = vld [vmem:[%s4 + $0x28] sm:$0xff]
        %v537 = vld [vmem:[%s4 + $0x30] sm:$0xff]
        %v538 = vld [vmem:[%s4 + $0x38] sm:$0xff]
        %540 = vset.pattern.permute.xlu0 0
        %541 = vperm.xlu0 %540, %v531
        %v542 = vpop.permute.xlu0 %541
        %545 = vset.pattern.permute.xlu0 0
        %546 = vperm.xlu0 %545, %v532
        %v547 = vpop.permute.xlu0 %546
        %550 = vset.pattern.permute.xlu0 0
        %551 = vperm.xlu0 %550, %v533
        %v552 = vpop.permute.xlu0 %551
        %555 = vset.pattern.permute.xlu0 0
        %556 = vperm.xlu0 %555, %v534
        %v557 = vpop.permute.xlu0 %556
        %560 = vset.pattern.permute.xlu0 0
        %561 = vperm.xlu0 %560, %v535
        %v562 = vpop.permute.xlu0 %561
        %565 = vset.pattern.permute.xlu0 0
        %566 = vperm.xlu0 %565, %v536
        %v567 = vpop.permute.xlu0 %566
        %570 = vset.pattern.permute.xlu0 0
        %571 = vperm.xlu0 %570, %v537
        %v572 = vpop.permute.xlu0 %571
        %575 = vset.pattern.permute.xlu0 0
        %576 = vperm.xlu0 %575, %v538
        %v577 = vpop.permute.xlu0 %576
        %v587 = vunpack.c.l.b16 %v515
        %v588 = vunpack.c.l.b16 %v516
        %v589 = vunpack.c.l.b16 %v517
        %v590 = vunpack.c.l.b16 %v518
        %v591 = vunpack.c.l.b16 %v519
        %v592 = vunpack.c.l.b16 %v520
        %v593 = vunpack.c.l.b16 %v521
        %v594 = vunpack.c.l.b16 %v522
        %v595 = vpack.c.b16 %v588, %v587
        %v596 = vpack.c.b16 %v590, %v589
        %v597 = vpack.c.b16 %v592, %v591
        %v598 = vpack.c.b16 %v594, %v593
        %vm599 = vcmask 523264
        %v601 = vsel %vm599, %v595, 0
        %v604 = vsel %vm599, %v596, 0
        %v607 = vsel %vm599, %v597, 0
        %v610 = vsel %vm599, %v598, 0
        %612 = vmatprep.subr.bf16.mxu0 %v524
        %613 = vmatpush1.bf16.msra.mxu0 %v523
        %614 = vmatprep.subr.bf16.mxu0 %v526
        %615 = vmatpush1.bf16.msra.mxu0 %v525
        %616 = vmatprep.subr.bf16.mxu0 %v528
        %617 = vmatpush1.bf16.msra.mxu0 %v527
        %618 = vmatprep.subr.bf16.mxu0 %v530
        %619 = vmatpush1.bf16.msra.mxu0 %v529
        %620 = vmatprep.subr.bf16.mxu0 0
        %621 = vmatpush1.bf16.msra.mxu0 0
        %622 = vmatprep.subr.bf16.mxu0 0
        %623 = vmatpush1.bf16.msra.mxu0 0
        %624 = vmatprep.subr.bf16.mxu0 0
        %625 = vmatpush1.bf16.msra.mxu0 0
        %626 = vmatprep.subr.bf16.mxu0 0
        %627 = vmatpush1.bf16.msra.mxu0 0
        %628 = vmatprep.subr.bf16.mxu0 0
        %629 = vmatpush1.bf16.msra.mxu0 0
        %630 = vmatprep.subr.bf16.mxu0 0
        %631 = vmatpush1.bf16.msra.mxu0 0
        %632 = vmatprep.subr.bf16.mxu0 0
        %633 = vmatpush1.bf16.msra.mxu0 0
        %634 = vmatprep.subr.bf16.mxu0 0
        %635 = vmatpush1.bf16.msra.mxu0 0
        %636 = vmatprep.subr.bf16.mxu0 0
        %637 = vmatpush1.bf16.msra.mxu0 0
        %638 = vmatprep.subr.bf16.mxu0 0
        %639 = vmatpush1.bf16.msra.mxu0 0
        %640 = vmatprep.subr.bf16.mxu0 0
        %641 = vmatpush1.bf16.msra.mxu0 0
        %642 = vmatprep.subr.bf16.mxu0 0
        %643 = vmatpush1.bf16.msra.mxu0 0
        %644 = vmatprep.mubr.bf16.mxu0 0
        %645 = vmatmul.mubr.bf16.gmra.mrb[0].mxu0 %v601
        %v646 = vpop.f32.mrb[0].mxu0
        %v647 = vadd.f32 %v542, %v646
        %v648 = vpop.f32.mrb[0].mxu0
        %v649 = vadd.f32 %v542, %v648
        %v650 = vpop.f32.mrb[0].mxu0
        %v651 = vadd.f32 %v547, %v650
        %v652 = vpop.f32.mrb[0].mxu0
        %v653 = vadd.f32 %v547, %v652
        %654 = vmatprep.mubr.bf16.mxu0 0
        %655 = vmatmul.mubr.bf16.gmra.mrb[0].mxu0 %v604
        %v656 = vpop.f32.mrb[0].mxu0
        %v657 = vadd.f32 %v552, %v656
        %v658 = vpop.f32.mrb[0].mxu0
        %v659 = vadd.f32 %v552, %v658
        %v660 = vpop.f32.mrb[0].mxu0
        %v661 = vadd.f32 %v557, %v660
        %v662 = vpop.f32.mrb[0].mxu0
        %v663 = vadd.f32 %v557, %v662
        %664 = vmatprep.mubr.bf16.mxu0 0
        %665 = vmatmul.mubr.bf16.gmra.mrb[0].mxu0 %v607
        %v666 = vpop.f32.mrb[0].mxu0
        %v667 = vadd.f32 %v562, %v666
        %v668 = vpop.f32.mrb[0].mxu0
        %v669 = vadd.f32 %v562, %v668
        %v670 = vpop.f32.mrb[0].mxu0
        %v671 = vadd.f32 %v567, %v670
        %v672 = vpop.f32.mrb[0].mxu0
        %v673 = vadd.f32 %v567, %v672
        %674 = vmatprep.mubr.bf16.mxu0 0
        %675 = vmatmul.mubr.bf16.gmra.mrb[0].mxu0 %v610
        %v676 = vpop.f32.mrb[0].mxu0
        %v677 = vadd.f32 %v572, %v676
        %v678 = vpop.f32.mrb[0].mxu0
        %v679 = vadd.f32 %v572, %v678
        %v680 = vpop.f32.mrb[0].mxu0
        %v681 = vadd.f32 %v577, %v680
        %v682 = vpop.f32.mrb[0].mxu0
        %v683 = vadd.f32 %v577, %v682
        %684 = vdwg.mxu0
        %v685 = vmax.f32 %v647, 0.0
        %v686 = vmax.f32 %v649, 0.0
        %v687 = vmax.f32 %v651, 0.0
        %v688 = vmax.f32 %v653, 0.0
        %v689 = vmax.f32 %v657, 0.0
        %v690 = vmax.f32 %v659, 0.0
        %v691 = vmax.f32 %v661, 0.0
        %v692 = vmax.f32 %v663, 0.0
        %v693 = vmax.f32 %v667, 0.0
        %v694 = vmax.f32 %v669, 0.0
        %v695 = vmax.f32 %v671, 0.0
        %v696 = vmax.f32 %v673, 0.0
        %v697 = vmax.f32 %v677, 0.0
        %v698 = vmax.f32 %v679, 0.0
        %v699 = vmax.f32 %v681, 0.0
        %v700 = vmax.f32 %v683, 0.0
        %s701 = scalar_lea.vmem %s3, 32
        %v702 = vld [vmem:[%s701] sm:$0xf]
        %v703 = vld [vmem:[%s701 + $0x4] sm:$0xf]
        %v704 = vld [vmem:[%s701 + $0x8] sm:$0xf]
        %v705 = vld [vmem:[%s701 + $0xc] sm:$0xf]
        %v706 = vld [vmem:[%s701 + $0x10] sm:$0xf]
        %v707 = vld [vmem:[%s701 + $0x14] sm:$0xf]
        %v708 = vld [vmem:[%s701 + $0x18] sm:$0xf]
        %v709 = vld [vmem:[%s701 + $0x1c] sm:$0xf]
        %v710 = vpack.c.bf16 %v687, %v685
        %v711 = vpack.c.bf16 %v688, %v686
        %v712 = vpack.c.bf16 %v691, %v689
        %v713 = vpack.c.bf16 %v692, %v690
        %v714 = vpack.c.bf16 %v695, %v693
        %v715 = vpack.c.bf16 %v696, %v694
        %v716 = vpack.c.bf16 %v699, %v697
        %v717 = vpack.c.bf16 %v700, %v698
        %s718 = scalar_lea.vmem %s4, 64
        %v719 = vld [vmem:[%s718] sm:$0xff]
        %v720 = vld [vmem:[%s718 + $0x8] sm:$0xff]
        %v721 = vld [vmem:[%s718 + $0x10] sm:$0xff]
        %v722 = vld [vmem:[%s718 + $0x18] sm:$0xff]
        %v723 = vld [vmem:[%s718 + $0x20] sm:$0xff]
        %v724 = vld [vmem:[%s718 + $0x28] sm:$0xff]
        %v725 = vld [vmem:[%s718 + $0x30] sm:$0xff]
        %v726 = vld [vmem:[%s718 + $0x38] sm:$0xff]
        %728 = vset.pattern.permute.xlu0 0
        %729 = vperm.xlu0 %728, %v719
        %v730 = vpop.permute.xlu0 %729
        %733 = vset.pattern.permute.xlu0 0
        %734 = vperm.xlu0 %733, %v720
        %v735 = vpop.permute.xlu0 %734
        %738 = vset.pattern.permute.xlu0 0
        %739 = vperm.xlu0 %738, %v721
        %v740 = vpop.permute.xlu0 %739
        %743 = vset.pattern.permute.xlu0 0
        %744 = vperm.xlu0 %743, %v722
        %v745 = vpop.permute.xlu0 %744
        %748 = vset.pattern.permute.xlu0 0
        %749 = vperm.xlu0 %748, %v723
        %v750 = vpop.permute.xlu0 %749
        %753 = vset.pattern.permute.xlu0 0
        %754 = vperm.xlu0 %753, %v724
        %v755 = vpop.permute.xlu0 %754
        %758 = vset.pattern.permute.xlu0 0
        %759 = vperm.xlu0 %758, %v725
        %v760 = vpop.permute.xlu0 %759
        %763 = vset.pattern.permute.xlu0 0
        %764 = vperm.xlu0 %763, %v726
        %v765 = vpop.permute.xlu0 %764
        %v775 = vunpack.c.l.b16 %v702
        %v776 = vunpack.c.l.b16 %v703
        %v777 = vunpack.c.l.b16 %v704
        %v778 = vunpack.c.l.b16 %v705
        %v779 = vunpack.c.l.b16 %v706
        %v780 = vunpack.c.l.b16 %v707
        %v781 = vunpack.c.l.b16 %v708
        %v782 = vunpack.c.l.b16 %v709
        %v783 = vpack.c.b16 %v776, %v775
        %v784 = vpack.c.b16 %v778, %v777
        %v785 = vpack.c.b16 %v780, %v779
        %v786 = vpack.c.b16 %v782, %v781
        %v788 = vsel %vm599, %v783, 0
        %v791 = vsel %vm599, %v784, 0
        %v794 = vsel %vm599, %v785, 0
        %v797 = vsel %vm599, %v786, 0
        %799 = vmatprep.subr.bf16.mxu0 %v711
        %800 = vmatpush1.bf16.msra.mxu0 %v710
        %801 = vmatprep.subr.bf16.mxu0 %v713
        %802 = vmatpush1.bf16.msra.mxu0 %v712
        %803 = vmatprep.subr.bf16.mxu0 %v715
        %804 = vmatpush1.bf16.msra.mxu0 %v714
        %805 = vmatprep.subr.bf16.mxu0 %v717
        %806 = vmatpush1.bf16.msra.mxu0 %v716
        %807 = vmatprep.subr.bf16.mxu0 0
        %808 = vmatpush1.bf16.msra.mxu0 0
        %809 = vmatprep.subr.bf16.mxu0 0
        %810 = vmatpush1.bf16.msra.mxu0 0
        %811 = vmatprep.subr.bf16.mxu0 0
        %812 = vmatpush1.bf16.msra.mxu0 0
        %813 = vmatprep.subr.bf16.mxu0 0
        %814 = vmatpush1.bf16.msra.mxu0 0
        %815 = vmatprep.subr.bf16.mxu0 0
        %816 = vmatpush1.bf16.msra.mxu0 0
        %817 = vmatprep.subr.bf16.mxu0 0
        %818 = vmatpush1.bf16.msra.mxu0 0
        %819 = vmatprep.subr.bf16.mxu0 0
        %820 = vmatpush1.bf16.msra.mxu0 0
        %821 = vmatprep.subr.bf16.mxu0 0
        %822 = vmatpush1.bf16.msra.mxu0 0
        %823 = vmatprep.subr.bf16.mxu0 0
        %824 = vmatpush1.bf16.msra.mxu0 0
        %825 = vmatprep.subr.bf16.mxu0 0
        %826 = vmatpush1.bf16.msra.mxu0 0
        %827 = vmatprep.subr.bf16.mxu0 0
        %828 = vmatpush1.bf16.msra.mxu0 0
        %829 = vmatprep.subr.bf16.mxu0 0
        %830 = vmatpush1.bf16.msra.mxu0 0
        %831 = vmatprep.mubr.bf16.mxu0 0
        %832 = vmatmul.mubr.bf16.gmra.mrb[0].mxu0 %v788
        %v833 = vpop.f32.mrb[0].mxu0
        %v834 = vadd.f32 %v730, %v833
        %v835 = vpop.f32.mrb[0].mxu0
        %v836 = vadd.f32 %v730, %v835
        %v837 = vpop.f32.mrb[0].mxu0
        %v838 = vadd.f32 %v735, %v837
        %v839 = vpop.f32.mrb[0].mxu0
        %v840 = vadd.f32 %v735, %v839
        %841 = vmatprep.mubr.bf16.mxu0 0
        %842 = vmatmul.mubr.bf16.gmra.mrb[0].mxu0 %v791
        %v843 = vpop.f32.mrb[0].mxu0
        %v844 = vadd.f32 %v740, %v843
        %v845 = vpop.f32.mrb[0].mxu0
        %v846 = vadd.f32 %v740, %v845
        %v847 = vpop.f32.mrb[0].mxu0
        %v848 = vadd.f32 %v745, %v847
        %v849 = vpop.f32.mrb[0].mxu0
        %v850 = vadd.f32 %v745, %v849
        %851 = vmatprep.mubr.bf16.mxu0 0
        %852 = vmatmul.mubr.bf16.gmra.mrb[0].mxu0 %v794
        %v853 = vpop.f32.mrb[0].mxu0
        %v854 = vadd.f32 %v750, %v853
        %v855 = vpop.f32.mrb[0].mxu0
        %v856 = vadd.f32 %v750, %v855
        %v857 = vpop.f32.mrb[0].mxu0
        %v858 = vadd.f32 %v755, %v857
        %v859 = vpop.f32.mrb[0].mxu0
        %v860 = vadd.f32 %v755, %v859
        %861 = vmatprep.mubr.bf16.mxu0 0
        %862 = vmatmul.mubr.bf16.gmra.mrb[0].mxu0 %v797
        %v863 = vpop.f32.mrb[0].mxu0
        %v864 = vadd.f32 %v760, %v863
        %v865 = vpop.f32.mrb[0].mxu0
        %v866 = vadd.f32 %v760, %v865
        %v867 = vpop.f32.mrb[0].mxu0
        %v868 = vadd.f32 %v765, %v867
        %v869 = vpop.f32.mrb[0].mxu0
        %v870 = vadd.f32 %v765, %v869
        %871 = vdwg.mxu0
        %v872 = vmax.f32 %v834, 0.0
        %v873 = vmax.f32 %v836, 0.0
        %v874 = vmax.f32 %v838, 0.0
        %v875 = vmax.f32 %v840, 0.0
        %v876 = vmax.f32 %v844, 0.0
        %v877 = vmax.f32 %v846, 0.0
        %v878 = vmax.f32 %v848, 0.0
        %v879 = vmax.f32 %v850, 0.0
        %v880 = vmax.f32 %v854, 0.0
        %v881 = vmax.f32 %v856, 0.0
        %v882 = vmax.f32 %v858, 0.0
        %v883 = vmax.f32 %v860, 0.0
        %v884 = vmax.f32 %v864, 0.0
        %v885 = vmax.f32 %v866, 0.0
        %v886 = vmax.f32 %v868, 0.0
        %v887 = vmax.f32 %v870, 0.0
        %s888 = scalar_lea.vmem %s3, 64
        %v889 = vld [vmem:[%s888] sm:$0xf]
        %v890 = vld [vmem:[%s888 + $0x4] sm:$0xf]
        %v891 = vld [vmem:[%s888 + $0x8] sm:$0xf]
        %v892 = vld [vmem:[%s888 + $0xc] sm:$0xf]
        %v893 = vld [vmem:[%s888 + $0x10] sm:$0xf]
        %v894 = vld [vmem:[%s888 + $0x14] sm:$0xf]
        %v895 = vld [vmem:[%s888 + $0x18] sm:$0xf]
        %v896 = vld [vmem:[%s888 + $0x1c] sm:$0xf]
        %v897 = vpack.c.bf16 %v874, %v872
        %v898 = vpack.c.bf16 %v875, %v873
        %v899 = vpack.c.bf16 %v878, %v876
        %v900 = vpack.c.bf16 %v879, %v877
        %v901 = vpack.c.bf16 %v882, %v880
        %v902 = vpack.c.bf16 %v883, %v881
        %v903 = vpack.c.bf16 %v886, %v884
        %v904 = vpack.c.bf16 %v887, %v885
        %s905 = scalar_lea.vmem %s4, 128
        %v906 = vld [vmem:[%s905] sm:$0xff]
        %v907 = vld [vmem:[%s905 + $0x8] sm:$0xff]
        %v908 = vld [vmem:[%s905 + $0x10] sm:$0xff]
        %v909 = vld [vmem:[%s905 + $0x18] sm:$0xff]
        %v910 = vld [vmem:[%s905 + $0x20] sm:$0xff]
        %v911 = vld [vmem:[%s905 + $0x28] sm:$0xff]
        %v912 = vld [vmem:[%s905 + $0x30] sm:$0xff]
        %v913 = vld [vmem:[%s905 + $0x38] sm:$0xff]
        %915 = vset.pattern.permute.xlu0 0
        %916 = vperm.xlu0 %915, %v906
        %v917 = vpop.permute.xlu0 %916
        %920 = vset.pattern.permute.xlu0 0
        %921 = vperm.xlu0 %920, %v907
        %v922 = vpop.permute.xlu0 %921
        %925 = vset.pattern.permute.xlu0 0
        %926 = vperm.xlu0 %925, %v908
        %v927 = vpop.permute.xlu0 %926
        %930 = vset.pattern.permute.xlu0 0
        %931 = vperm.xlu0 %930, %v909
        %v932 = vpop.permute.xlu0 %931
        %935 = vset.pattern.permute.xlu0 0
        %936 = vperm.xlu0 %935, %v910
        %v937 = vpop.permute.xlu0 %936
        %940 = vset.pattern.permute.xlu0 0
        %941 = vperm.xlu0 %940, %v911
        %v942 = vpop.permute.xlu0 %941
        %945 = vset.pattern.permute.xlu0 0
        %946 = vperm.xlu0 %945, %v912
        %v947 = vpop.permute.xlu0 %946
        %950 = vset.pattern.permute.xlu0 0
        %951 = vperm.xlu0 %950, %v913
        %v952 = vpop.permute.xlu0 %951
        %v962 = vunpack.c.l.b16 %v889
        %v963 = vunpack.c.l.b16 %v890
        %v964 = vunpack.c.l.b16 %v891
        %v965 = vunpack.c.l.b16 %v892
        %v966 = vunpack.c.l.b16 %v893
        %v967 = vunpack.c.l.b16 %v894
        %v968 = vunpack.c.l.b16 %v895
        %v969 = vunpack.c.l.b16 %v896
        %v970 = vpack.c.b16 %v963, %v962
        %v971 = vpack.c.b16 %v965, %v964
        %v972 = vpack.c.b16 %v967, %v966
        %v973 = vpack.c.b16 %v969, %v968
        %v975 = vsel %vm599, %v970, 0
        %v978 = vsel %vm599, %v971, 0
        %v981 = vsel %vm599, %v972, 0
        %v984 = vsel %vm599, %v973, 0
        %986 = vmatprep.subr.bf16.mxu0 %v898
        %987 = vmatpush1.bf16.msra.mxu0 %v897
        %988 = vmatprep.subr.bf16.mxu0 %v900
        %989 = vmatpush1.bf16.msra.mxu0 %v899
        %990 = vmatprep.subr.bf16.mxu0 %v902
        %991 = vmatpush1.bf16.msra.mxu0 %v901
        %992 = vmatprep.subr.bf16.mxu0 %v904
        %993 = vmatpush1.bf16.msra.mxu0 %v903
        %994 = vmatprep.subr.bf16.mxu0 0
        %995 = vmatpush1.bf16.msra.mxu0 0
        %996 = vmatprep.subr.bf16.mxu0 0
        %997 = vmatpush1.bf16.msra.mxu0 0
        %998 = vmatprep.subr.bf16.mxu0 0
        %999 = vmatpush1.bf16.msra.mxu0 0
        %1000 = vmatprep.subr.bf16.mxu0 0
        %1001 = vmatpush1.bf16.msra.mxu0 0
        %1002 = vmatprep.subr.bf16.mxu0 0
        %1003 = vmatpush1.bf16.msra.mxu0 0
        %1004 = vmatprep.subr.bf16.mxu0 0
        %1005 = vmatpush1.bf16.msra.mxu0 0
        %1006 = vmatprep.subr.bf16.mxu0 0
        %1007 = vmatpush1.bf16.msra.mxu0 0
        %1008 = vmatprep.subr.bf16.mxu0 0
        %1009 = vmatpush1.bf16.msra.mxu0 0
        %1010 = vmatprep.subr.bf16.mxu0 0
        %1011 = vmatpush1.bf16.msra.mxu0 0
        %1012 = vmatprep.subr.bf16.mxu0 0
        %1013 = vmatpush1.bf16.msra.mxu0 0
        %1014 = vmatprep.subr.bf16.mxu0 0
        %1015 = vmatpush1.bf16.msra.mxu0 0
        %1016 = vmatprep.subr.bf16.mxu0 0
        %1017 = vmatpush1.bf16.msra.mxu0 0
        %1018 = vmatprep.mubr.bf16.mxu0 0
        %1019 = vmatmul.mubr.bf16.gmra.mrb[0].mxu0 %v975
        %v1020 = vpop.f32.mrb[0].mxu0
        %v1021 = vadd.f32 %v917, %v1020
        %v1022 = vpop.f32.mrb[0].mxu0
        %v1023 = vadd.f32 %v917, %v1022
        %v1024 = vpop.f32.mrb[0].mxu0
        %v1025 = vadd.f32 %v922, %v1024
        %v1026 = vpop.f32.mrb[0].mxu0
        %v1027 = vadd.f32 %v922, %v1026
        %1028 = vmatprep.mubr.bf16.mxu0 0
        %1029 = vmatmul.mubr.bf16.gmra.mrb[0].mxu0 %v978
        %v1030 = vpop.f32.mrb[0].mxu0
        %v1031 = vadd.f32 %v927, %v1030
        %v1032 = vpop.f32.mrb[0].mxu0
        %v1033 = vadd.f32 %v927, %v1032
        %v1034 = vpop.f32.mrb[0].mxu0
        %v1035 = vadd.f32 %v932, %v1034
        %v1036 = vpop.f32.mrb[0].mxu0
        %v1037 = vadd.f32 %v932, %v1036
        %1038 = vmatprep.mubr.bf16.mxu0 0
        %1039 = vmatmul.mubr.bf16.gmra.mrb[0].mxu0 %v981
        %v1040 = vpop.f32.mrb[0].mxu0
        %v1041 = vadd.f32 %v937, %v1040
        %v1042 = vpop.f32.mrb[0].mxu0
        %v1043 = vadd.f32 %v937, %v1042
        %v1044 = vpop.f32.mrb[0].mxu0
        %v1045 = vadd.f32 %v942, %v1044
        %v1046 = vpop.f32.mrb[0].mxu0
        %v1047 = vadd.f32 %v942, %v1046
        %1048 = vmatprep.mubr.bf16.mxu0 0
        %1049 = vmatmul.mubr.bf16.gmra.mrb[0].mxu0 %v984
        %v1050 = vpop.f32.mrb[0].mxu0
        %v1051 = vadd.f32 %v947, %v1050
        %v1052 = vpop.f32.mrb[0].mxu0
        %v1053 = vadd.f32 %v947, %v1052
        %v1054 = vpop.f32.mrb[0].mxu0
        %v1055 = vadd.f32 %v952, %v1054
        %v1056 = vpop.f32.mrb[0].mxu0
        %v1057 = vadd.f32 %v952, %v1056
        %1058 = vdwg.mxu0
        %v1059 = vmax.f32 %v1021, 0.0
        %v1060 = vmax.f32 %v1023, 0.0
        %v1061 = vmax.f32 %v1025, 0.0
        %v1062 = vmax.f32 %v1027, 0.0
        %v1063 = vmax.f32 %v1031, 0.0
        %v1064 = vmax.f32 %v1033, 0.0
        %v1065 = vmax.f32 %v1035, 0.0
        %v1066 = vmax.f32 %v1037, 0.0
        %v1067 = vmax.f32 %v1041, 0.0
        %v1068 = vmax.f32 %v1043, 0.0
        %v1069 = vmax.f32 %v1045, 0.0
        %v1070 = vmax.f32 %v1047, 0.0
        %v1071 = vmax.f32 %v1051, 0.0
        %v1072 = vmax.f32 %v1053, 0.0
        %v1073 = vmax.f32 %v1055, 0.0
        %v1074 = vmax.f32 %v1057, 0.0
        %v1075 = vld [vmem:[%s5] sm:$0x1]
        %v1076 = vpack.c.bf16 %v1061, %v1059
        %v1077 = vpack.c.bf16 %v1062, %v1060
        %v1078 = vpack.c.bf16 %v1065, %v1063
        %v1079 = vpack.c.bf16 %v1066, %v1064
        %v1080 = vpack.c.bf16 %v1069, %v1067
        %v1081 = vpack.c.bf16 %v1070, %v1068
        %v1082 = vpack.c.bf16 %v1073, %v1071
        %v1083 = vpack.c.bf16 %v1074, %v1072
        %s1084 = sld [smem:[#allocation2]]
        %v1085 = vstv %s1084
        %v1087 = vsel %vm599, %v1075, 0
        %1089 = vmatprep.subr.bf16.mxu0 %v1077
        %1090 = vmatpush1.bf16.msra.mxu0 %v1076
        %1091 = vmatprep.subr.bf16.mxu0 %v1079
        %1092 = vmatpush1.bf16.msra.mxu0 %v1078
        %1093 = vmatprep.subr.bf16.mxu0 %v1081
        %1094 = vmatpush1.bf16.msra.mxu0 %v1080
        %1095 = vmatprep.subr.bf16.mxu0 %v1083
        %1096 = vmatpush1.bf16.msra.mxu0 %v1082
        %1097 = vmatprep.subr.bf16.mxu0 0
        %1098 = vmatpush1.bf16.msra.mxu0 0
        %1099 = vmatprep.subr.bf16.mxu0 0
        %1100 = vmatpush1.bf16.msra.mxu0 0
        %1101 = vmatprep.subr.bf16.mxu0 0
        %1102 = vmatpush1.bf16.msra.mxu0 0
        %1103 = vmatprep.subr.bf16.mxu0 0
        %1104 = vmatpush1.bf16.msra.mxu0 0
        %1105 = vmatprep.subr.bf16.mxu0 0
        %1106 = vmatpush1.bf16.msra.mxu0 0
        %1107 = vmatprep.subr.bf16.mxu0 0
        %1108 = vmatpush1.bf16.msra.mxu0 0
        %1109 = vmatprep.subr.bf16.mxu0 0
        %1110 = vmatpush1.bf16.msra.mxu0 0
        %1111 = vmatprep.subr.bf16.mxu0 0
        %1112 = vmatpush1.bf16.msra.mxu0 0
        %1113 = vmatprep.subr.bf16.mxu0 0
        %1114 = vmatpush1.bf16.msra.mxu0 0
        %1115 = vmatprep.subr.bf16.mxu0 0
        %1116 = vmatpush1.bf16.msra.mxu0 0
        %1117 = vmatprep.subr.bf16.mxu0 0
        %1118 = vmatpush1.bf16.msra.mxu0 0
        %1119 = vmatprep.subr.bf16.mxu0 0
        %1120 = vmatpush1.bf16.msra.mxu0 0
        %1121 = vmatprep.mubr.bf16.mxu0 0
        %1122 = vmatmul.mubr.bf16.gmra.mrb[0].mxu0 %v1087
        %v1123 = vpop.f32.mrb[0].mxu0
        %v1124 = vadd.f32 %v1085, %v1123
        %v1125 = vpop.f32.mrb[0].mxu0
        %v1126 = vadd.f32 %v1085, %v1125
        %v1127 = vpop.f32.mrb[0].mxu0
        %v1128 = vpop.f32.mrb[0].mxu0
        %1129 = vdwg.mxu0
        %v1132 = vcombine.low %v1124, %v1126
        %v1134 = vunpack.c.l.s4 1966171168
        %v1135 = vunpack.c.0.s8 %v1134
        %v1136 = vlaneseq
        %v1137 = vshrl.u32 %v1136, 7
        %v1138 = vsub.s32 %v1135, %v1137
        %v1139 = vrot.slane %v1132, %v1138
        %v1141 = vunpack.c.l.s4 1966171168
        %v1142 = vunpack.c.0.s8 %v1141
        %v1143 = vlaneseq
        %v1144 = vshrl.u32 %v1143, 7
        %v1145 = vsub.s32 %v1142, %v1144
        %v1146 = vrot.slane %v1139, %v1145
        %v1148 = vlaneseq
        %vm1149 = vcmp.ge.s32.totalorder %v1148, 0
        %vm1150 = vcmp.lt.s32.totalorder %v1148, 256
        %vm1151 = vmand %vm1149, %vm1150
        %1152 = vst.msk [vmem:[%s317] sm:$0x3] %vm1151, %v1146
        %s1153 = smul.u32 2, %s19
        %p1154 = scmp.lt.s32.totalorder %s1153, 3
        %s1155 = scalar_select %p1154, %s1153, 3
        %s1156 = scalar_lea.vmem %s7, %s1155
        // Predicated region
        $region87: #{binary_classification_forward.1} parent=81 // pred_check
          %p1157 = pneg %p189
        $region88: #{binary_classification_forward.1} parent=81 // pred_check_branch
          %1159 = sbr.rel (%p1157) target = $region90
        $region89: #{binary_classification_forward.1} parent=81 // pred_region
          %s1160 = smul.u32 2, %s19
        $region90: #{binary_classification_forward.1} parent=81 // pred_fallthru
          _
      $region82: #{binary_classification_forward.1} parent=5 // pred_fallthru
        _
      %p1161 = scmp.le.s32.totalorder 2, %s14
      // Predicated region
      $region91: #{binary_classification_forward.1} parent=5 // pred_check
        %p1162 = pneg %p1161
      $region92: #{binary_classification_forward.1} parent=5 // pred_check_branch
        %1164 = sbr.rel (%p1162) target = $region94
      $region93: #{binary_classification_forward.1} parent=5 // pred_region
        %s1165 = ssub.s32 %s14, 2
        // Predicated region
        $region95: #{binary_classification_forward.1} parent=93 // pred_check
          %p1166 = pneg %p195
        $region96: #{binary_classification_forward.1} parent=93 // pred_check_branch
          %1168 = sbr.rel (%p1166) target = $region98
        $region97: #{binary_classification_forward.1} parent=93 // pred_region
          %s1169 = smul.u32 2, %s20
          %p1170 = scmp.lt.s32.totalorder %s1169, 3
          %s1171 = scalar_select %p1170, %s1169, 3
          %s1172 = scalar_lea.vmem %s7, %s1171
        $region98: #{binary_classification_forward.1} parent=93 // pred_fallthru
          _
      $region94: #{binary_classification_forward.1} parent=5 // pred_fallthru
        _
    $region6: #{binary_classification_forward.1} parent=1 // loop_footer
      %s18 = sadd.s32 1, %s14
    $region7: #{binary_classification_forward.1} parent=1 // loop_footer_branch
      %13 = sbr.rel target = $region3
    $region8: #{binary_classification_forward.1} parent=1 // loop_exit
      _

</llo_original>
